<compile_context>
chip_gen: v5e
topology: v5e:2x2
jax: 0.10.0
libtpu: 0.0.40
codegen_flags: <defaults>
</compile_context>

<pallas_src>
import math
from functools import partial

import jax
import jax.numpy as jnp
from jax.experimental import pallas as pl
from jax.experimental.pallas import tpu as pltpu


_LOG2 = math.log(2.0)
_HALF_LOG_2PI = 0.5 * math.log(2.0 * math.pi)


def _round_up(x, m):
    return ((x + m - 1) // m) * m


def _softplus(x):
    # numerically stable softplus; shared by kernel and reference.
    # (kept instead of log1p(1 - tanh^2) so the squash correction stays stable
    #  for large |a_pre|, matching torch's F.softplus-based formula exactly)
    return jnp.maximum(x, 0.0) + jnp.log(1.0 + jnp.exp(-jnp.abs(x)))


# ----------------------------------------------------------------------------
# Kernel
# ----------------------------------------------------------------------------
def actor_kernel(xe_ref, w1_ref, w2h_ref, b_ref, out_ref, *,
                 act_dim, hp, ap, sp, max_action):
    # xe: (TB, Sp+Ap) f32 packed input: lanes [0:S)=x, [sp:sp+A)=eps, rest 0.
    xe = xe_ref[...]
    x_bf = xe.astype(jnp.bfloat16)          # eps lanes hit zeroed w1 rows
    eps = xe[:, sp:sp + ap]                 # (TB, Ap) f32, 128-aligned slice

    # Static, 128-aligned slices of the packed bias / weight panels.
    b1 = b_ref[:, 0:hp]                     # (1, Hp)       f32
    b2 = b_ref[:, hp:2 * hp]                # (1, Hp)       f32
    bh = b_ref[:, 2 * hp:]                  # (1, 2*Ap)     f32
    w2 = w2h_ref[:, 0:hp]                   # (Hp, Hp)      bf16
    wh = w2h_ref[:, hp:]                    # (Hp, 2*Ap)    bf16 (mean | log_std)

    # Layer 1 + ReLU   (f32 accumulation throughout)
    h = jnp.dot(x_bf, w1_ref[...], preferred_element_type=jnp.float32) + b1
    h = jnp.maximum(h, 0.0).astype(jnp.bfloat16)
    # Layer 2 + ReLU
    h = jnp.dot(h, w2, preferred_element_type=jnp.float32) + b2
    h = jnp.maximum(h, 0.0).astype(jnp.bfloat16)
    # Fused heads: lanes [0:Ap)=mean panel, [Ap:2Ap)=log_std panel.
    heads = jnp.dot(h, wh, preferred_element_type=jnp.float32) + bh

    mean = heads[:, 0:ap]                                   # aligned view
    log_std = jnp.clip(heads[:, ap:2 * ap], -20.0, 2.0)     # aligned view
    std = jnp.exp(log_std)

    a_pre = mean + std * eps                # Normal(mean, std).rsample()

    # log N(a_pre | mean, std) with (a_pre - mean)/std == eps
    logp = -0.5 * eps * eps - log_std - _HALF_LOG_2PI
    # tanh change-of-variables correction: 2*(log 2 - a - softplus(-2a))
    corr = 2.0 * (_LOG2 - a_pre - _softplus(-2.0 * a_pre))

    # Padded lanes (>= act_dim) must not contribute to the reduction
    # (they would each add -0.5*log(2*pi) otherwise).
    lane = jax.lax.broadcasted_iota(jnp.int32, logp.shape, 1)
    valid = lane < act_dim
    log_pi = jnp.sum(jnp.where(valid, logp - corr, 0.0),
                     axis=1, keepdims=True)                 # (TB, 1)

    a = max_action * jnp.tanh(a_pre)        # padded lanes are exactly 0

    # Single lane-dense full-width store: [action panel | log_pi panel]
    out_ref[...] = jnp.concatenate(
        [a, jnp.broadcast_to(log_pi, a.shape)], axis=1).astype(out_ref.dtype)


# ----------------------------------------------------------------------------
# Parameters (PyTorch nn.Linear-style init, weights stored as [in, out])
# ----------------------------------------------------------------------------
def init_linear_params(key, in_features, out_features):
    kw, kb = jax.random.split(key)
    bound = 1.0 / math.sqrt(in_features)
    w = jax.random.uniform(kw, (in_features, out_features), jnp.float32,
                           minval=-bound, maxval=bound)
    b = jax.random.uniform(kb, (1, out_features), jnp.float32,
                           minval=-bound, maxval=bound)
    return w, b


def make_actor_params(key, state_dim, action_dim, hidden_width):
    k1, k2, k3, k4 = jax.random.split(key, 4)
    p = {}
    p["w1"], p["b1"] = init_linear_params(k1, state_dim, hidden_width)
    p["w2"], p["b2"] = init_linear_params(k2, hidden_width, hidden_width)
    p["w_mean"], p["b_mean"] = init_linear_params(k3, hidden_width, action_dim)
    p["w_log_std"], p["b_log_std"] = init_linear_params(k4, hidden_width, action_dim)
    return p


def pack_actor_params(params, state_dim, action_dim, hidden_width):
    """One-time packing (NOT per forward call):
    - per-head 128-lane panels (mean / log_std) so kernel slices are aligned,
    - w1 padded to a (Sp+Ap, Hp) panel with the eps rows zeroed (x/eps fusion),
    - all H-row weights merged into one bf16 buffer, all biases into one f32
      buffer, every lane dim a 128 multiple."""
    H, A, S = hidden_width, action_dim, state_dim
    assert S <= 128 and A <= 128, "packing assumes state_dim, action_dim <= 128"
    Hp = _round_up(H, 128)
    Ap = _round_up(A, 128)          # per-head lane panel
    Sp = _round_up(S, 128)          # x panel width inside the packed input
    Kp = Sp + Ap                    # packed input width (x panel + eps panel)

    def pad2(x, shape):
        return jnp.zeros(shape, x.dtype).at[:x.shape[0], :x.shape[1]].set(x)

    # layer-1 weights: rows [0:S) = w1, eps rows [Sp:Sp+Ap) stay zero.
    w1p = pad2(params["w1"], (Kp, Hp)).astype(jnp.bfloat16)

    w2p = pad2(params["w2"], (Hp, Hp))
    wmp = pad2(params["w_mean"], (Hp, Ap))
    wsp = pad2(params["w_log_std"], (Hp, Ap))
    w2hp = jnp.concatenate([w2p, wmp, wsp], axis=1).astype(jnp.bfloat16)  # (Hp, Hp+2Ap)

    b1p = pad2(params["b1"], (1, Hp))
    b2p = pad2(params["b2"], (1, Hp))
    bmp = pad2(params["b_mean"], (1, Ap))
    bsp = pad2(params["b_log_std"], (1, Ap))
    b_all = jnp.concatenate([b1p, b2p, bmp, bsp], axis=1)                 # (1, 2Hp+2Ap) f32

    return {"w1p": w1p, "w2hp": w2hp, "b_all": b_all,
            "Hp": Hp, "Ap": Ap, "Sp": Sp, "Kp": Kp}


# ----------------------------------------------------------------------------
# Batch tiling heuristic
# ----------------------------------------------------------------------------
def _choose_tb(B):
    if B <= 256:
        return B                    # single tile; full-extent block is legal
    # cap tiles at 1024 rows, MXU-friendly multiples of 256, and an even tile
    # count so v7x's two TensorCores both get balanced work.
    n_tiles = max(2, -(-B // 1024))
    if n_tiles % 2:
        n_tiles += 1
    return _round_up(-(-B // n_tiles), 256)


# ----------------------------------------------------------------------------
# Forward wrapper
# ----------------------------------------------------------------------------
def actor_forward(x, eps, packed, *, action_dim, max_action):
    """Pallas equivalent of Actor.forward(x) -> (a, log_pi).
    eps ~ N(0, 1) supplies the rsample noise; eps = 0 gives deterministic=True."""
    B, S = x.shape
    Hp, Ap, Sp, Kp = packed["Hp"], packed["Ap"], packed["Sp"], packed["Kp"]
    A = action_dim
    A2p = 2 * Ap

    TB = _choose_tb(B)
    Bp = _round_up(B, TB)
    grid = (Bp // TB,)

    # Fused, lane-padded input: lanes [0:S)=x, [Sp:Sp+A)=eps, rest 0.
    # Batch rows >= B are zero (finite, no NaNs) and dropped after the call.
    xe = jnp.zeros((Bp, Kp), jnp.float32)
    xe = xe.at[:B, :S].set(x)
    xe = xe.at[:B, Sp:Sp + A].set(eps)

    kernel = partial(actor_kernel, act_dim=A, hp=Hp, ap=Ap, sp=Sp,
                     max_action=float(max_action))

    flops = 2 * Bp * (Kp * Hp + Hp * Hp + Hp * A2p)
    bytes_accessed = (xe.size * 4 + packed["w1p"].size * 2
                      + packed["w2hp"].size * 2 + packed["b_all"].size * 4
                      + Bp * A2p * 4)
    cost = pl.CostEstimate(flops=int(flops),
                           transcendentals=int(5 * Bp * Ap),
                           bytes_accessed=int(bytes_accessed))

    out = pl.pallas_call(
        kernel,
        out_shape=jax.ShapeDtypeStruct((Bp, A2p), jnp.float32),
        grid=grid,
        in_specs=[
            pl.BlockSpec((TB, Kp), lambda i: (i, 0)),            # x||eps: batch-tiled
            pl.BlockSpec((Kp, Hp), lambda i: (0, 0)),            # w1: resident
            pl.BlockSpec((Hp, Hp + A2p), lambda i: (0, 0)),      # w2||heads: resident
            pl.BlockSpec((1, 2 * Hp + A2p), lambda i: (0, 0)),   # biases: resident
        ],
        out_specs=pl.BlockSpec((TB, A2p), lambda i: (i, 0)),
        compiler_params=pltpu.CompilerParams(
            dimension_semantics=("parallel",)),
        cost_estimate=cost,
    )(xe, packed["w1p"], packed["w2hp"], packed["b_all"])

    a = out[:B, :A]                    # action lanes [0:A) of the action panel
    log_pi = out[:B, Ap:Ap + 1]        # any lane of the log_pi panel
    return a, log_pi


# ----------------------------------------------------------------------------
# Pure-JAX reference (same bf16-matmul / f32-accumulate math)
# ----------------------------------------------------------------------------
def actor_forward_ref(x, eps, params, *, max_action):
    def mm(a, w):
        return jnp.dot(a.astype(jnp.bfloat16), w.astype(jnp.bfloat16),
                       preferred_element_type=jnp.float32)

    h = jnp.maximum(mm(x, params["w1"]) + params["b1"], 0.0)
    h = jnp.maximum(mm(h, params["w2"]) + params["b2"], 0.0)
    mean = mm(h, params["w_mean"]) + params["b_mean"]
    log_std = jnp.clip(mm(h, params["w_log_std"]) + params["b_log_std"], -20.0, 2.0)
    std = jnp.exp(log_std)
    a_pre = mean + std * eps
    log_pi = jnp.sum(-0.5 * eps * eps - log_std - _HALF_LOG_2PI,
                     axis=1, keepdims=True)
    log_pi -= jnp.sum(2.0 * (_LOG2 - a_pre - _softplus(-2.0 * a_pre)),
                      axis=1, keepdims=True)
    a = max_action * jnp.tanh(a_pre)
    return a, log_pi


if __name__ == "__main__":
    # Small shapes consistent with the module: batch=8, state_dim=12,
    # action_dim=4, hidden_width=32, max_action=2.0
    batch, state_dim, action_dim, hidden_width = 8, 12, 4, 32
    max_action = 2.0

    key = jax.random.PRNGKey(0)
    k_x, k_eps, k_p = jax.random.split(key, 3)

    x = jax.random.normal(k_x, (batch, state_dim), jnp.float32)
    eps = jax.random.normal(k_eps, (batch, action_dim), jnp.float32)  # rsample noise

    params = make_actor_params(k_p, state_dim, action_dim, hidden_width)
    packed = pack_actor_params(params, state_dim, action_dim, hidden_width)

    a, log_pi = actor_forward(x, eps, packed,
                              action_dim=action_dim, max_action=max_action)
    jax.block_until_ready((a, log_pi))

    a_ref, log_pi_ref = actor_forward_ref(x, eps, params, max_action=max_action)

    assert a.shape == (batch, action_dim) and log_pi.shape == (batch, 1)
    # bf16 matmul path -> relaxed tolerance
    assert jnp.allclose(a, a_ref, atol=2e-2, rtol=2e-2)
    assert jnp.allclose(log_pi, log_pi_ref, atol=2e-2, rtol=2e-2)

    print("KERNEL_OK")
</pallas_src>

<mosaic_0001>
module attributes {stable_mosaic.version = 11 : i64} {
  func.func @actor_kernel(%arg0: i32, %arg1: memref<8x256xf32, #tpu.memory_space<vmem>>, %arg2: memref<256x128xbf16, #tpu.memory_space<vmem>>, %arg3: memref<128x384xbf16, #tpu.memory_space<vmem>>, %arg4: memref<1x512xf32, #tpu.memory_space<vmem>>, %arg5: memref<8x256xf32, #tpu.memory_space<vmem>>) attributes {dimension_semantics = [#tpu.dimension_semantics<parallel>], iteration_bounds = array<i64: 1>, scalar_prefetch = 0 : i64, scratch_operands = 0 : i64, tpu.core_type = #tpu.core_type<tc>, window_params = [{transform_indices = @transform_0, window_bounds = array<i64: 8, 256>}, {pipeline_mode = #tpu.pipeline_mode<synchronous>, transform_indices = @transform_1, window_bounds = array<i64: 256, 128>}, {pipeline_mode = #tpu.pipeline_mode<synchronous>, transform_indices = @transform_2, window_bounds = array<i64: 128, 384>}, {pipeline_mode = #tpu.pipeline_mode<synchronous>, transform_indices = @transform_3, window_bounds = array<i64: 1, 512>}, {transform_indices = @transform_4, window_bounds = array<i64: 8, 256>}]} {
    %c0 = arith.constant 0 : index
    %c0_0 = arith.constant 0 : index
    %0 = vector.load %arg1[%c0, %c0_0] : memref<8x256xf32, #tpu.memory_space<vmem>>, vector<8x256xf32>
    %1 = arith.truncf %0 : vector<8x256xf32> to vector<8x256xbf16>
    %2 = vector.extract_strided_slice %0 {offsets = [0, 128], sizes = [8, 128], strides = [1, 1]} : vector<8x256xf32> to vector<8x128xf32>
    %c0_1 = arith.constant 0 : index
    %c0_2 = arith.constant 0 : index
    %3 = vector.load %arg4[%c0_1, %c0_2] : memref<1x512xf32, #tpu.memory_space<vmem>>, vector<1x128xf32>
    %c0_3 = arith.constant 0 : index
    %c128 = arith.constant 128 : index
    %4 = vector.load %arg4[%c0_3, %c128] : memref<1x512xf32, #tpu.memory_space<vmem>>, vector<1x128xf32>
    %c0_4 = arith.constant 0 : index
    %c256 = arith.constant 256 : index
    %5 = vector.load %arg4[%c0_4, %c256] : memref<1x512xf32, #tpu.memory_space<vmem>>, vector<1x256xf32>
    %c0_5 = arith.constant 0 : index
    %c0_6 = arith.constant 0 : index
    %6 = vector.load %arg3[%c0_5, %c0_6] : memref<128x384xbf16, #tpu.memory_space<vmem>>, vector<128x128xbf16>
    %c0_7 = arith.constant 0 : index
    %c128_8 = arith.constant 128 : index
    %7 = vector.load %arg3[%c0_7, %c128_8] : memref<128x384xbf16, #tpu.memory_space<vmem>>, vector<128x256xbf16>
    %c0_9 = arith.constant 0 : index
    %c0_10 = arith.constant 0 : index
    %8 = vector.load %arg2[%c0_9, %c0_10] : memref<256x128xbf16, #tpu.memory_space<vmem>>, vector<256x128xbf16>
    %cst = arith.constant dense<0.000000e+00> : vector<8x128xf32>
    %9 = tpu.matmul %1, %8, %cst {dimension_numbers = #tpu.dot_dimension_numbers<[1], [0], [0], [1], [0, 0, 1, 1], [], []>} : vector<8x256xbf16>, vector<256x128xbf16>, vector<8x128xf32> -> vector<8x128xf32>
    %10 = vector.broadcast %3 : vector<1x128xf32> to vector<8x128xf32>
    %11 = arith.addf %9, %10 : vector<8x128xf32>
    %cst_11 = arith.constant 0.000000e+00 : f32
    %12 = vector.broadcast %cst_11 : f32 to vector<8x128xf32>
    %13 = arith.maximumf %11, %12 : vector<8x128xf32>
    %14 = arith.truncf %13 : vector<8x128xf32> to vector<8x128xbf16>
    %cst_12 = arith.constant dense<0.000000e+00> : vector<8x128xf32>
    %15 = tpu.matmul %14, %6, %cst_12 {dimension_numbers = #tpu.dot_dimension_numbers<[1], [0], [0], [1], [0, 0, 1, 1], [], []>} : vector<8x128xbf16>, vector<128x128xbf16>, vector<8x128xf32> -> vector<8x128xf32>
    %16 = vector.broadcast %4 : vector<1x128xf32> to vector<8x128xf32>
    %17 = arith.addf %15, %16 : vector<8x128xf32>
    %cst_13 = arith.constant 0.000000e+00 : f32
    %18 = vector.broadcast %cst_13 : f32 to vector<8x128xf32>
    %19 = arith.maximumf %17, %18 : vector<8x128xf32>
    %20 = arith.truncf %19 : vector<8x128xf32> to vector<8x128xbf16>
    %cst_14 = arith.constant dense<0.000000e+00> : vector<8x256xf32>
    %21 = tpu.matmul %20, %7, %cst_14 {dimension_numbers = #tpu.dot_dimension_numbers<[1], [0], [0], [1], [0, 0, 1, 1], [], []>} : vector<8x128xbf16>, vector<128x256xbf16>, vector<8x256xf32> -> vector<8x256xf32>
    %22 = vector.broadcast %5 : vector<1x256xf32> to vector<8x256xf32>
    %23 = arith.addf %21, %22 : vector<8x256xf32>
    %24 = vector.extract_strided_slice %23 {offsets = [0, 0], sizes = [8, 128], strides = [1, 1]} : vector<8x256xf32> to vector<8x128xf32>
    %25 = vector.extract_strided_slice %23 {offsets = [0, 128], sizes = [8, 128], strides = [1, 1]} : vector<8x256xf32> to vector<8x128xf32>
    %cst_15 = arith.constant -2.000000e+01 : f32
    %cst_16 = arith.constant 2.000000e+00 : f32
    %26 = vector.broadcast %cst_15 : f32 to vector<8x128xf32>
    %27 = arith.maximumf %26, %25 : vector<8x128xf32>
    %28 = vector.broadcast %cst_16 : f32 to vector<8x128xf32>
    %29 = arith.minimumf %28, %27 : vector<8x128xf32>
    %30 = math.exp %29 : vector<8x128xf32>
    %31 = arith.mulf %30, %2 : vector<8x128xf32>
    %32 = arith.addf %24, %31 : vector<8x128xf32>
    %cst_17 = arith.constant -5.000000e-01 : f32
    %33 = vector.broadcast %cst_17 : f32 to vector<8x128xf32>
    %34 = arith.mulf %33, %2 : vector<8x128xf32>
    %35 = arith.mulf %34, %2 : vector<8x128xf32>
    %36 = arith.subf %35, %29 : vector<8x128xf32>
    %cst_18 = arith.constant 0.918938517 : f32
    %37 = vector.broadcast %cst_18 : f32 to vector<8x128xf32>
    %38 = arith.subf %36, %37 : vector<8x128xf32>
    %cst_19 = arith.constant 0.693147182 : f32
    %39 = vector.broadcast %cst_19 : f32 to vector<8x128xf32>
    %40 = arith.subf %39, %32 : vector<8x128xf32>
    %cst_20 = arith.constant -2.000000e+00 : f32
    %41 = vector.broadcast %cst_20 : f32 to vector<8x128xf32>
    %42 = arith.mulf %41, %32 : vector<8x128xf32>
    %cst_21 = arith.constant 0.000000e+00 : f32
    %43 = vector.broadcast %cst_21 : f32 to vector<8x128xf32>
    %44 = arith.maximumf %42, %43 : vector<8x128xf32>
    %45 = math.absf %42 : vector<8x128xf32>
    %cst_22 = arith.constant 0.000000e+00 : f32
    %46 = vector.broadcast %cst_22 : f32 to vector<8x128xf32>
    %47 = arith.subf %46, %45 : vector<8x128xf32>
    %48 = math.exp %47 : vector<8x128xf32>
    %cst_23 = arith.constant 1.000000e+00 : f32
    %49 = vector.broadcast %cst_23 : f32 to vector<8x128xf32>
    %50 = arith.addf %49, %48 : vector<8x128xf32>
    %51 = math.log %50 : vector<8x128xf32>
    %52 = arith.addf %44, %51 : vector<8x128xf32>
    %53 = arith.subf %40, %52 : vector<8x128xf32>
    %cst_24 = arith.constant 2.000000e+00 : f32
    %54 = vector.broadcast %cst_24 : f32 to vector<8x128xf32>
    %55 = arith.mulf %54, %53 : vector<8x128xf32>
    %56 = tpu.iota {dimensions = array<i32: 1>} : vector<8x128xi32>
    %c4_i32 = arith.constant 4 : i32
    %57 = vector.broadcast %c4_i32 : i32 to vector<8x128xi32>
    %58 = arith.cmpi slt, %56, %57 : vector<8x128xi32>
    %59 = arith.subf %38, %55 : vector<8x128xf32>
    %cst_25 = arith.constant 0.000000e+00 : f32
    %60 = vector.broadcast %cst_25 : f32 to vector<8x128xf32>
    %61 = arith.select %58, %59, %60 : vector<8x128xi1>, vector<8x128xf32>
    %cst_26 = arith.constant dense<0.000000e+00> : vector<8xf32>
    %62 = vector.multi_reduction <add>, %61, %cst_26 [1] : vector<8x128xf32> to vector<8xf32>
    %63 = vector.shape_cast %62 : vector<8xf32> to vector<8x1xf32>
    %64 = math.tanh %32 : vector<8x128xf32>
    %cst_27 = arith.constant 2.000000e+00 : f32
    %65 = vector.broadcast %cst_27 : f32 to vector<8x128xf32>
    %66 = arith.mulf %65, %64 : vector<8x128xf32>
    %67 = vector.shape_cast %63 : vector<8x1xf32> to vector<8x1xf32>
    %68 = vector.broadcast %67 : vector<8x1xf32> to vector<8x128xf32>
    %69 = tpu.concatenate %66, %68 in 1 : vector<8x128xf32>, vector<8x128xf32> -> vector<8x256xf32>
    %c0_28 = arith.constant 0 : index
    %c0_29 = arith.constant 0 : index
    %70 = vector.load %arg5[%c0_28, %c0_29] : memref<8x256xf32, #tpu.memory_space<vmem>>, vector<8x256xf32>
    tpu.vector_store %arg5[%c0_28, %c0_29], %69 {strides = array<i32>} : memref<8x256xf32, #tpu.memory_space<vmem>>, vector<8x256xf32>,
    return
  }
  func.func @transform_0(%arg0: i32) -> (i32, i32) {
    %c0_i32 = arith.constant 0 : i32
    %c0_i32_0 = arith.constant 0 : i32
    return %arg0, %c0_i32 : i32, i32
  }
  func.func @transform_1(%arg0: i32) -> (i32, i32) {
    %c0_i32 = arith.constant 0 : i32
    %c0_i32_0 = arith.constant 0 : i32
    %c0_i32_1 = arith.constant 0 : i32
    return %c0_i32, %c0_i32_0 : i32, i32
  }
  func.func @transform_2(%arg0: i32) -> (i32, i32) {
    %c0_i32 = arith.constant 0 : i32
    %c0_i32_0 = arith.constant 0 : i32
    %c0_i32_1 = arith.constant 0 : i32
    return %c0_i32, %c0_i32_0 : i32, i32
  }
  func.func @transform_3(%arg0: i32) -> (i32, i32) {
    %c0_i32 = arith.constant 0 : i32
    %c0_i32_0 = arith.constant 0 : i32
    %c0_i32_1 = arith.constant 0 : i32
    return %c0_i32, %c0_i32_0 : i32, i32
  }
  func.func @transform_4(%arg0: i32) -> (i32, i32) {
    %c0_i32 = arith.constant 0 : i32
    %c0_i32_0 = arith.constant 0 : i32
    return %arg0, %c0_i32 : i32, i32
  }
}

</mosaic_0001>

<llo_original>
// kernel: tpu_custom_call.1
$region0: #{tpu_custom_call.1}
  #allocation0 [shape = 'u32[]', space=smem, size = 0x4, offset = 0x4, fixed_abs, tag = 'smem constant byte address 0x4 - core index']
  #allocation1 [shape = 'u32[72,128]{1,0:T(1,128)}', space=vmem, size = 0x9000, scoped, tag = 'internal scratch']
  %s0 = inlined_call_operand.hbm [shape: f32[8,256], index: 0, kind: input, shape index: {}]
  %s1 = inlined_call_operand.hbm [shape: bf16[256,128], index: 1, kind: input, shape index: {}]
  %s2 = inlined_call_operand.hbm [shape: bf16[128,384], index: 2, kind: input, shape index: {}]
  %s3 = inlined_call_operand.hbm [shape: f32[1,512], index: 3, kind: input, shape index: {}]
  %s4 = inlined_call_operand.hbm [shape: f32[8,256], index: 4, kind: output, shape index: {}]
  %s5 = sld [smem:[#allocation0]]
  $region42: #{tpu_custom_call.1} parent=0
    _
  %s7 = ssub.s32 1, %s5
  %s8 = scalar_select 0, %s7, %s5
  $region1: #{tpu_custom_call.1} parent=0
    #allocation2 [shape = 'u8[8192]{0}', space=vmem, size = 0x2000, scoped, tag = 'input window, operand 0, single buffered']
    #allocation3 [shape = 's32[1]{0}', space=sflag, size = 0x4, scoped, tag = 'scoped memory for tpu_custom_call.1']
    #allocation4 [shape = 's32[1]{0}', space=sflag, size = 0x4, scoped, tag = 'scoped memory for tpu_custom_call.1']
    #allocation5 [shape = 'u8[65536]{0}', space=vmem, size = 0x10000, scoped, tag = 'input window, operand 1, single buffered']
    #allocation6 [shape = 's32[1]{0}', space=sflag, size = 0x4, scoped, tag = 'scoped memory for tpu_custom_call.1']
    #allocation7 [shape = 'u8[98304]{0}', space=vmem, size = 0x18000, scoped, tag = 'input window, operand 2, single buffered']
    #allocation8 [shape = 'u8[2048]{0}', space=vmem, size = 0x800, scoped, tag = 'input window, operand 3, single buffered']
    #allocation9 [shape = 's32[1]{0}', space=sflag, size = 0x4, scoped, tag = 'scoped memory for tpu_custom_call.1']
    #allocation10 [shape = 'u8[8192]{0}', space=vmem, size = 0x2000, scoped, tag = 'output window, operand 0, single buffered']
    %9 = vsyncpa [#allocation3], 0
    %10 = vsyncpa [#allocation6], 0
    %11 = vsyncpa [#allocation9], 0
    %12 = vsyncpa [#allocation4], 0
    // Predicated region
    $region2: #{tpu_custom_call.1} parent=1 // pred_check
      _
    $region3: #{tpu_custom_call.1} parent=1 // pred_check_branch
      %14 = sbr.rel (0) target = $region5
    $region4: #{tpu_custom_call.1} parent=1 // pred_region
      %16 = vsyncadd [#allocation3], 0
      %s18 = sshll.u32 %s0, 4
      %s19 = int_to_ptr.hbm [resolvable:$true] %s18
      %s20 = sshll.u32 [#allocation2], 4
      %s21 = int_to_ptr.vmem [resolvable:$true] %s20
      %23 = dma.hbm_to_vmem [thread:$0]  %s19, 256, %s21, [#allocation3]
    $region5: #{tpu_custom_call.1} parent=1 // pred_fallthru
      _
    // Predicated region
    $region6: #{tpu_custom_call.1} parent=1 // pred_check
      _
    $region7: #{tpu_custom_call.1} parent=1 // pred_check_branch
      %25 = sbr.rel (0) target = $region9
    $region8: #{tpu_custom_call.1} parent=1 // pred_region
      %27 = vsyncadd [#allocation6], 0
      %s28 = sshll.u32 %s1, 4
      %s29 = int_to_ptr.hbm [resolvable:$true] %s28
      %s30 = sshll.u32 [#allocation5], 4
      %s31 = int_to_ptr.vmem [resolvable:$true] %s30
      %36 = dma.hbm_to_vmem [thread:$0]  %s29, 2048, %s31, [#allocation6], 64, 64, 4
    $region9: #{tpu_custom_call.1} parent=1 // pred_fallthru
      _
    // Predicated region
    $region10: #{tpu_custom_call.1} parent=1 // pred_check
      _
    $region11: #{tpu_custom_call.1} parent=1 // pred_check_branch
      %38 = sbr.rel (0) target = $region13
    $region12: #{tpu_custom_call.1} parent=1 // pred_region
      %40 = vsyncadd [#allocation6], 0
      %s41 = sshll.u32 %s2, 4
      %s42 = int_to_ptr.hbm [resolvable:$true] %s41
      %s43 = sshll.u32 [#allocation7], 4
      %s44 = int_to_ptr.vmem [resolvable:$true] %s43
      %49 = dma.hbm_to_vmem [thread:$0]  %s42, 3072, %s44, [#allocation6], 192, 192, 12
    $region13: #{tpu_custom_call.1} parent=1 // pred_fallthru
      _
    // Predicated region
    $region14: #{tpu_custom_call.1} parent=1 // pred_check
      _
    $region15: #{tpu_custom_call.1} parent=1 // pred_check_branch
      %51 = sbr.rel (0) target = $region17
    $region16: #{tpu_custom_call.1} parent=1 // pred_region
      %53 = vsyncadd [#allocation9], 0
      %s55 = sshll.u32 %s3, 4
      %s56 = int_to_ptr.hbm [resolvable:$true] %s55
      %s57 = sshll.u32 [#allocation8], 4
      %s58 = int_to_ptr.vmem [resolvable:$true] %s57
      %60 = dma.hbm_to_vmem [thread:$0]  %s56, 64, %s58, [#allocation9]
    $region17: #{tpu_custom_call.1} parent=1 // pred_fallthru
      _
    // Predicated region
    $region18: #{tpu_custom_call.1} parent=1 // pred_check
      _
    $region19: #{tpu_custom_call.1} parent=1 // pred_check_branch
      %62 = sbr.rel (0) target = $region21
    $region20: #{tpu_custom_call.1} parent=1 // pred_region
      %64 = dma.done [#allocation3], 256
    $region21: #{tpu_custom_call.1} parent=1 // pred_fallthru
      _
    // Predicated region
    $region22: #{tpu_custom_call.1} parent=1 // pred_check
      _
    $region23: #{tpu_custom_call.1} parent=1 // pred_check_branch
      %66 = sbr.rel (0) target = $region25
    $region24: #{tpu_custom_call.1} parent=1 // pred_region
      %68 = dma.done [#allocation6], 2048
    $region25: #{tpu_custom_call.1} parent=1 // pred_fallthru
      _
    // Predicated region
    $region26: #{tpu_custom_call.1} parent=1 // pred_check
      _
    $region27: #{tpu_custom_call.1} parent=1 // pred_check_branch
      %70 = sbr.rel (0) target = $region29
    $region28: #{tpu_custom_call.1} parent=1 // pred_region
      %72 = dma.done [#allocation6], 3072
    $region29: #{tpu_custom_call.1} parent=1 // pred_fallthru
      _
    // Predicated region
    $region30: #{tpu_custom_call.1} parent=1 // pred_check
      _
    $region31: #{tpu_custom_call.1} parent=1 // pred_check_branch
      %74 = sbr.rel (0) target = $region33
    $region32: #{tpu_custom_call.1} parent=1 // pred_region
      %76 = dma.done [#allocation9], 64
    $region33: #{tpu_custom_call.1} parent=1 // pred_fallthru
      _
    %v77 = vld [vmem:[#allocation2] sm:$0xff]
    %v78 = vld [vmem:[#allocation2 + $0x8] sm:$0xff]
    %v79 = vpack.c.bf16 %v77, %v77
    %v80 = vpack.c.bf16 %v78, %v78
    %v81 = vld [vmem:[#allocation8] sm:$0x1]
    %v82 = vld [vmem:[#allocation8 + $0x1] sm:$0x1]
    %v83 = vld [vmem:[#allocation8 + $0x2] sm:$0x3]
    %v84 = vld [vmem:[#allocation7] sm:$0xf]
    %v85 = vld [vmem:[#allocation7 + $0xc] sm:$0xf]
    %v86 = vld [vmem:[#allocation7 + $0x18] sm:$0xf]
    %v87 = vld [vmem:[#allocation7 + $0x24] sm:$0xf]
    %v88 = vld [vmem:[#allocation7 + $0x30] sm:$0xf]
    %v89 = vld [vmem:[#allocation7 + $0x3c] sm:$0xf]
    %v90 = vld [vmem:[#allocation7 + $0x48] sm:$0xf]
    %v91 = vld [vmem:[#allocation7 + $0x54] sm:$0xf]
    %v92 = vld [vmem:[#allocation7 + $0x60] sm:$0xf]
    %v93 = vld [vmem:[#allocation7 + $0x6c] sm:$0xf]
    %v94 = vld [vmem:[#allocation7 + $0x78] sm:$0xf]
    %v95 = vld [vmem:[#allocation7 + $0x84] sm:$0xf]
    %v96 = vld [vmem:[#allocation7 + $0x90] sm:$0xf]
    %v97 = vld [vmem:[#allocation7 + $0x9c] sm:$0xf]
    %v98 = vld [vmem:[#allocation7 + $0xa8] sm:$0xf]
    %v99 = vld [vmem:[#allocation7 + $0xb4] sm:$0xf]
    %v100 = vld [vmem:[#allocation7 + $0x4] sm:$0xff]
    %v101 = vld [vmem:[#allocation7 + $0x10] sm:$0xff]
    %v102 = vld [vmem:[#allocation7 + $0x1c] sm:$0xff]
    %v103 = vld [vmem:[#allocation7 + $0x28] sm:$0xff]
    %v104 = vld [vmem:[#allocation7 + $0x34] sm:$0xff]
    %v105 = vld [vmem:[#allocation7 + $0x40] sm:$0xff]
    %v106 = vld [vmem:[#allocation7 + $0x4c] sm:$0xff]
    %v107 = vld [vmem:[#allocation7 + $0x58] sm:$0xff]
    %v108 = vld [vmem:[#allocation7 + $0x64] sm:$0xff]
    %v109 = vld [vmem:[#allocation7 + $0x70] sm:$0xff]
    %v110 = vld [vmem:[#allocation7 + $0x7c] sm:$0xff]
    %v111 = vld [vmem:[#allocation7 + $0x88] sm:$0xff]
    %v112 = vld [vmem:[#allocation7 + $0x94] sm:$0xff]
    %v113 = vld [vmem:[#allocation7 + $0xa0] sm:$0xff]
    %v114 = vld [vmem:[#allocation7 + $0xac] sm:$0xff]
    %v115 = vld [vmem:[#allocation7 + $0xb8] sm:$0xff]
    %v116 = vld [vmem:[#allocation5] sm:$0xf]
    %v117 = vld [vmem:[#allocation5 + $0x4] sm:$0xf]
    %v118 = vld [vmem:[#allocation5 + $0x8] sm:$0xf]
    %v119 = vld [vmem:[#allocation5 + $0xc] sm:$0xf]
    %v120 = vld [vmem:[#allocation5 + $0x10] sm:$0xf]
    %v121 = vld [vmem:[#allocation5 + $0x14] sm:$0xf]
    %v122 = vld [vmem:[#allocation5 + $0x18] sm:$0xf]
    %v123 = vld [vmem:[#allocation5 + $0x1c] sm:$0xf]
    %v124 = vld [vmem:[#allocation5 + $0x20] sm:$0xf]
    %v125 = vld [vmem:[#allocation5 + $0x24] sm:$0xf]
    %v126 = vld [vmem:[#allocation5 + $0x28] sm:$0xf]
    %v127 = vld [vmem:[#allocation5 + $0x2c] sm:$0xf]
    %v128 = vld [vmem:[#allocation5 + $0x30] sm:$0xf]
    %v129 = vld [vmem:[#allocation5 + $0x34] sm:$0xf]
    %v130 = vld [vmem:[#allocation5 + $0x38] sm:$0xf]
    %v131 = vld [vmem:[#allocation5 + $0x3c] sm:$0xf]
    %v132 = vld [vmem:[#allocation5 + $0x40] sm:$0xf]
    %v133 = vld [vmem:[#allocation5 + $0x44] sm:$0xf]
    %v134 = vld [vmem:[#allocation5 + $0x48] sm:$0xf]
    %v135 = vld [vmem:[#allocation5 + $0x4c] sm:$0xf]
    %v136 = vld [vmem:[#allocation5 + $0x50] sm:$0xf]
    %v137 = vld [vmem:[#allocation5 + $0x54] sm:$0xf]
    %v138 = vld [vmem:[#allocation5 + $0x58] sm:$0xf]
    %v139 = vld [vmem:[#allocation5 + $0x5c] sm:$0xf]
    %v140 = vld [vmem:[#allocation5 + $0x60] sm:$0xf]
    %v141 = vld [vmem:[#allocation5 + $0x64] sm:$0xf]
    %v142 = vld [vmem:[#allocation5 + $0x68] sm:$0xf]
    %v143 = vld [vmem:[#allocation5 + $0x6c] sm:$0xf]
    %v144 = vld [vmem:[#allocation5 + $0x70] sm:$0xf]
    %v145 = vld [vmem:[#allocation5 + $0x74] sm:$0xf]
    %v146 = vld [vmem:[#allocation5 + $0x78] sm:$0xf]
    %v147 = vld [vmem:[#allocation5 + $0x7c] sm:$0xf]
    %v149 = vperm.slane %v81, 0
    %v183 = vunpack.c.l.b16 %v116
    %v184 = vunpack.c.l.b16 %v117
    %v185 = vunpack.c.l.b16 %v118
    %v186 = vunpack.c.l.b16 %v119
    %v187 = vunpack.c.l.b16 %v120
    %v188 = vunpack.c.l.b16 %v121
    %v189 = vunpack.c.l.b16 %v122
    %v190 = vunpack.c.l.b16 %v123
    %v191 = vunpack.c.l.b16 %v124
    %v192 = vunpack.c.l.b16 %v125
    %v193 = vunpack.c.l.b16 %v126
    %v194 = vunpack.c.l.b16 %v127
    %v195 = vunpack.c.l.b16 %v128
    %v196 = vunpack.c.l.b16 %v129
    %v197 = vunpack.c.l.b16 %v130
    %v198 = vunpack.c.l.b16 %v131
    %v199 = vunpack.c.l.b16 %v132
    %v200 = vunpack.c.l.b16 %v133
    %v201 = vunpack.c.l.b16 %v134
    %v202 = vunpack.c.l.b16 %v135
    %v203 = vunpack.c.l.b16 %v136
    %v204 = vunpack.c.l.b16 %v137
    %v205 = vunpack.c.l.b16 %v138
    %v206 = vunpack.c.l.b16 %v139
    %v207 = vunpack.c.l.b16 %v140
    %v208 = vunpack.c.l.b16 %v141
    %v209 = vunpack.c.l.b16 %v142
    %v210 = vunpack.c.l.b16 %v143
    %v211 = vunpack.c.l.b16 %v144
    %v212 = vunpack.c.l.b16 %v145
    %v213 = vunpack.c.l.b16 %v146
    %v214 = vunpack.c.l.b16 %v147
    %v215 = vpack.c.b16 %v184, %v183
    %v216 = vpack.c.b16 %v186, %v185
    %v217 = vpack.c.b16 %v188, %v187
    %v218 = vpack.c.b16 %v190, %v189
    %v219 = vpack.c.b16 %v192, %v191
    %v220 = vpack.c.b16 %v194, %v193
    %v221 = vpack.c.b16 %v196, %v195
    %v222 = vpack.c.b16 %v198, %v197
    %v223 = vpack.c.b16 %v200, %v199
    %v224 = vpack.c.b16 %v202, %v201
    %v225 = vpack.c.b16 %v204, %v203
    %v226 = vpack.c.b16 %v206, %v205
    %v227 = vpack.c.b16 %v208, %v207
    %v228 = vpack.c.b16 %v210, %v209
    %v229 = vpack.c.b16 %v212, %v211
    %v230 = vpack.c.b16 %v214, %v213
    %247 = vmatpush.bf16.msra.mxu0 %v222
    %248 = vmatpush.bf16.msra.mxu0 %v221
    %249 = vmatpush.bf16.msra.mxu0 %v220
    %250 = vmatpush.bf16.msra.mxu0 %v219
    %251 = vmatpush.bf16.msra.mxu0 %v218
    %252 = vmatpush.bf16.msra.mxu0 %v217
    %253 = vmatpush.bf16.msra.mxu0 %v216
    %254 = vmatpush.bf16.msra.mxu0 %v215
    %255 = vmatmul.bf16.gmra.mxu0 %v79
    %v256 = vpop.f32.mrf.mxu0
    %v257 = vadd.f32 %v149, %v256
    %v258 = vpop.f32.mrf.mxu0
    %259 = vdwg.mxu0
    %260 = vmatpush.bf16.msra.mxu0 %v230
    %261 = vmatpush.bf16.msra.mxu0 %v229
    %262 = vmatpush.bf16.msra.mxu0 %v228
    %263 = vmatpush.bf16.msra.mxu0 %v227
    %264 = vmatpush.bf16.msra.mxu0 %v226
    %265 = vmatpush.bf16.msra.mxu0 %v225
    %266 = vmatpush.bf16.msra.mxu0 %v224
    %267 = vmatpush.bf16.msra.mxu0 %v223
    %268 = vmatmul.bf16.gmra.mxu0 %v80
    %v269 = vpop.f32.mrf.mxu0
    %v270 = vadd.f32 %v257, %v269
    %v271 = vpop.f32.mrf.mxu0
    %272 = vdwg.mxu0
    %v273 = vmax.f32 %v270, 0.0
    %v274 = vpack.c.bf16 %v273, %v273
    %v276 = vperm.slane %v82, 0
    %v294 = vunpack.c.l.b16 %v84
    %v295 = vunpack.c.l.b16 %v85
    %v296 = vunpack.c.l.b16 %v86
    %v297 = vunpack.c.l.b16 %v87
    %v298 = vunpack.c.l.b16 %v88
    %v299 = vunpack.c.l.b16 %v89
    %v300 = vunpack.c.l.b16 %v90
    %v301 = vunpack.c.l.b16 %v91
    %v302 = vunpack.c.l.b16 %v92
    %v303 = vunpack.c.l.b16 %v93
    %v304 = vunpack.c.l.b16 %v94
    %v305 = vunpack.c.l.b16 %v95
    %v306 = vunpack.c.l.b16 %v96
    %v307 = vunpack.c.l.b16 %v97
    %v308 = vunpack.c.l.b16 %v98
    %v309 = vunpack.c.l.b16 %v99
    %v310 = vpack.c.b16 %v295, %v294
    %v311 = vpack.c.b16 %v297, %v296
    %v312 = vpack.c.b16 %v299, %v298
    %v313 = vpack.c.b16 %v301, %v300
    %v314 = vpack.c.b16 %v303, %v302
    %v315 = vpack.c.b16 %v305, %v304
    %v316 = vpack.c.b16 %v307, %v306
    %v317 = vpack.c.b16 %v309, %v308
    %326 = vmatpush.bf16.msra.mxu0 %v317
    %327 = vmatpush.bf16.msra.mxu0 %v316
    %328 = vmatpush.bf16.msra.mxu0 %v315
    %329 = vmatpush.bf16.msra.mxu0 %v314
    %330 = vmatpush.bf16.msra.mxu0 %v313
    %331 = vmatpush.bf16.msra.mxu0 %v312
    %332 = vmatpush.bf16.msra.mxu0 %v311
    %333 = vmatpush.bf16.msra.mxu0 %v310
    %334 = vmatmul.bf16.gmra.mxu0 %v274
    %v335 = vpop.f32.mrf.mxu0
    %v336 = vadd.f32 %v276, %v335
    %v337 = vpop.f32.mrf.mxu0
    %338 = vdwg.mxu0
    %v339 = vmax.f32 %v336, 0.0
    %v340 = vpack.c.bf16 %v339, %v339
    %v342 = vperm.slane %v83, 0
    %v343 = vperm.slane %v83, 1
    %v362 = vunpack.c.l.b16 %v100
    %v363 = vunpack.c.h.b16 %v100
    %v364 = vunpack.c.l.b16 %v101
    %v365 = vunpack.c.h.b16 %v101
    %v366 = vunpack.c.l.b16 %v102
    %v367 = vunpack.c.h.b16 %v102
    %v368 = vunpack.c.l.b16 %v103
    %v369 = vunpack.c.h.b16 %v103
    %v370 = vunpack.c.l.b16 %v104
    %v371 = vunpack.c.h.b16 %v104
    %v372 = vunpack.c.l.b16 %v105
    %v373 = vunpack.c.h.b16 %v105
    %v374 = vunpack.c.l.b16 %v106
    %v375 = vunpack.c.h.b16 %v106
    %v376 = vunpack.c.l.b16 %v107
    %v377 = vunpack.c.h.b16 %v107
    %v378 = vunpack.c.l.b16 %v108
    %v379 = vunpack.c.h.b16 %v108
    %v380 = vunpack.c.l.b16 %v109
    %v381 = vunpack.c.h.b16 %v109
    %v382 = vunpack.c.l.b16 %v110
    %v383 = vunpack.c.h.b16 %v110
    %v384 = vunpack.c.l.b16 %v111
    %v385 = vunpack.c.h.b16 %v111
    %v386 = vunpack.c.l.b16 %v112
    %v387 = vunpack.c.h.b16 %v112
    %v388 = vunpack.c.l.b16 %v113
    %v389 = vunpack.c.h.b16 %v113
    %v390 = vunpack.c.l.b16 %v114
    %v391 = vunpack.c.h.b16 %v114
    %v392 = vunpack.c.l.b16 %v115
    %v393 = vunpack.c.h.b16 %v115
    %v394 = vpack.c.b16 %v364, %v362
    %v395 = vpack.c.b16 %v365, %v363
    %v396 = vpack.c.b16 %v368, %v366
    %v397 = vpack.c.b16 %v369, %v367
    %v398 = vpack.c.b16 %v372, %v370
    %v399 = vpack.c.b16 %v373, %v371
    %v400 = vpack.c.b16 %v376, %v374
    %v401 = vpack.c.b16 %v377, %v375
    %v402 = vpack.c.b16 %v380, %v378
    %v403 = vpack.c.b16 %v381, %v379
    %v404 = vpack.c.b16 %v384, %v382
    %v405 = vpack.c.b16 %v385, %v383
    %v406 = vpack.c.b16 %v388, %v386
    %v407 = vpack.c.b16 %v389, %v387
    %v408 = vpack.c.b16 %v392, %v390
    %v409 = vpack.c.b16 %v393, %v391
    %426 = vmatpush.bf16.msra.mxu0 %v408
    %427 = vmatpush.bf16.msra.mxu0 %v406
    %428 = vmatpush.bf16.msra.mxu0 %v404
    %429 = vmatpush.bf16.msra.mxu0 %v402
    %430 = vmatpush.bf16.msra.mxu0 %v400
    %431 = vmatpush.bf16.msra.mxu0 %v398
    %432 = vmatpush.bf16.msra.mxu0 %v396
    %433 = vmatpush.bf16.msra.mxu0 %v394
    %434 = vmatmul.bf16.gmra.mxu0 %v340
    %v435 = vpop.f32.mrf.mxu0
    %v436 = vadd.f32 %v342, %v435
    %v437 = vpop.f32.mrf.mxu0
    %438 = vdwg.mxu0
    %439 = vmatpush.bf16.msra.mxu0 %v409
    %440 = vmatpush.bf16.msra.mxu0 %v407
    %441 = vmatpush.bf16.msra.mxu0 %v405
    %442 = vmatpush.bf16.msra.mxu0 %v403
    %443 = vmatpush.bf16.msra.mxu0 %v401
    %444 = vmatpush.bf16.msra.mxu0 %v399
    %445 = vmatpush.bf16.msra.mxu0 %v397
    %446 = vmatpush.bf16.msra.mxu0 %v395
    %447 = vmatmul.bf16.gmra.mxu0 %v340
    %v448 = vpop.f32.mrf.mxu0
    %v449 = vadd.f32 %v343, %v448
    %v450 = vpop.f32.mrf.mxu0
    %451 = vdwg.mxu0
    %v452 = vmax.f32 %v449, -20.0
    %v453 = vmin.f32 %v452, 2.0
    %v454 = vmul.f32 %v453, 1.442695
    %v455 = vpow.pop %v454
    %v456 = vmul.f32 %v455, %v78
    %v457 = vadd.f32 %v436, %v456
    %v458 = vmul.f32 %v78, -0.5
    %v459 = vmul.f32 %v458, %v78
    %v460 = vsub.f32 %v459, %v453
    %v461 = vsub.f32 %v460, 0.9189385
    %v462 = vsub.f32 0.6931472, %v457
    %v463 = vmul.f32 %v457, -2.0
    %v464 = vmax.f32 %v463, 0.0
    %v465 = vand.u32 2147483647, %v463
    %v466 = vsub.f32 0.0, %v465
    %v467 = vmul.f32 %v466, 1.442695
    %v468 = vpow.pop %v467
    %v469 = vadd.f32 %v468, 1.0
    %v470 = vlog2.pop %v469
    %v471 = vmul.f32 %v470, 0.6931472
    %v472 = vadd.f32 %v464, %v471
    %v473 = vsub.f32 %v462, %v472
    %v474 = vmul.f32 %v473, 2.0
    %v475 = vlaneseq
    %v476 = vand.u32 %v475, 127
    %vm477 = vcmp.lt.s32.totalorder %v476, 4
    %v478 = vsub.f32 %v461, %v474
    %v479 = vsel %vm477, %v478, 0.0
    %480 = vadd.xlane.f32.xlu0 %v479
    %v481 = vpop.xlane.xlu0 %480
    %v482 = vtanh.pop %v457
    %v483 = vmul.f32 %v482, 2.0
    %484 = vst [vmem:[#allocation10] sm:$0xff] %v483
    %485 = vst [vmem:[#allocation10 + $0x8] sm:$0xff] %v481
    // Predicated region
    $region34: #{tpu_custom_call.1} parent=1 // pred_check
      _
    $region35: #{tpu_custom_call.1} parent=1 // pred_check_branch
      %487 = sbr.rel (0) target = $region37
    $region36: #{tpu_custom_call.1} parent=1 // pred_region
      %489 = vsyncadd [#allocation4], 0
      %s491 = sshll.u32 [#allocation10], 4
      %s492 = int_to_ptr.vmem [resolvable:$true] %s491
      %s493 = sshll.u32 %s4, 4
      %s494 = int_to_ptr.hbm [resolvable:$true] %s493
      %496 = dma.vmem_to_hbm [thread:$0]  %s492, 256, %s494, [#allocation4]
    $region37: #{tpu_custom_call.1} parent=1 // pred_fallthru
      _
    // Predicated region
    $region38: #{tpu_custom_call.1} parent=1 // pred_check
      _
    $region39: #{tpu_custom_call.1} parent=1 // pred_check_branch
      %498 = sbr.rel (0) target = $region41
    $region40: #{tpu_custom_call.1} parent=1 // pred_region
      %500 = dma.done [#allocation4], 256
    $region41: #{tpu_custom_call.1} parent=1 // pred_fallthru
      _
    %501 = vsyncpa [#allocation3], 1
    %502 = vsyncpa [#allocation6], 1
    %503 = vsyncpa [#allocation9], 1
    %504 = vsyncpa [#allocation4], 1

</llo_original>
